<compile_context>
chip_gen: v7x
topology: tpu7x:2x2x1
jax: 0.10.0
libtpu: 0.0.40
codegen_flags: <defaults>
</compile_context>

<pallas_src>
import functools
import math

import jax
import jax.numpy as jnp
from jax.experimental import pallas as pl
from jax.experimental.pallas import tpu as pltpu

LN_EPS = 1e-5


# ----------------------------- small config (BJConfig, reduced) ----------------
class Cfg:
    n_mels = 16
    conv_ch = [8, 8, 8]
    conv_k = [5, 3, 3]
    conv_str = [(2, 1), (2, 2), (2, 2)]
    layers = 2
    d_model = 32
    n_heads = 4
    ff_mult = 4


# ----------------------------- shared in-kernel helpers -------------------------
def _layernorm(x, g, b):
    mu = jnp.mean(x, axis=-1, keepdims=True)
    var = jnp.mean(jnp.square(x - mu), axis=-1, keepdims=True)
    return (x - mu) * jax.lax.rsqrt(var + LN_EPS) * g + b


def _erf_approx(x):
    # Abramowitz & Stegun 7.1.26 (|err| < 1.5e-7); matches torch.nn.GELU (exact erf).
    p = 0.3275911
    a1, a2, a3, a4, a5 = 0.254829592, -0.284496736, 1.421413741, -1.453152027, 1.061405429
    sgn = jnp.where(x >= 0.0, 1.0, -1.0)
    ax = jnp.abs(x)
    t = 1.0 / (1.0 + p * ax)
    poly = ((((a5 * t + a4) * t + a3) * t + a2) * t + a1) * t
    return sgn * (1.0 - poly * jnp.exp(-ax * ax))


def _gelu_exact(x):
    return 0.5 * x * (1.0 + _erf_approx(x * 0.7071067811865476))


# ----------------------------- tiled matmul + bias kernel ------------------------
def _matmul_bias_kernel(a_ref, w_ref, b_ref, o_ref):
    o_ref[...] = (jnp.dot(a_ref[...].astype(jnp.bfloat16), w_ref[...],
                          preferred_element_type=jnp.float32) + b_ref[...])


def matmul_bias(a, w_bf16, b, tm=1024):
    """a: (M, K) f32, w_bf16: (K, N) bf16, b: (1, N) f32 -> (M, N) f32.

    M-tiled (double-buffered, 'parallel') so large im2col matrices stream through
    VMEM; when M <= tm the grid degenerates to a single step.  A partial last tile
    relies on Pallas OOB padding (safe: no accumulation across tiles).
    """
    M, K = a.shape
    N = w_bf16.shape[1]
    tm = min(tm, M)
    return pl.pallas_call(
        _matmul_bias_kernel,
        grid=(pl.cdiv(M, tm),),
        in_specs=[
            pl.BlockSpec((tm, K), lambda i: (i, 0)),
            pl.BlockSpec((K, N), lambda i: (0, 0)),
            pl.BlockSpec((1, N), lambda i: (0, 0)),
        ],
        out_specs=pl.BlockSpec((tm, N), lambda i: (i, 0)),
        out_shape=jax.ShapeDtypeStruct((M, N), jnp.float32),
        compiler_params=pltpu.CompilerParams(dimension_semantics=("parallel",)),
    )(a, w_bf16, b)


# ----------------------------- fused SDPA transformer block ----------------------
def _sdpa_block_kernel(x_ref, cos_ref, sin_ref,
                       g1_ref, b1_ref, wqkv_ref, bqkv_ref,
                       wo_ref, bo_ref, g2_ref, b2_ref,
                       w1_ref, b1f_ref, w2_ref, b2f_ref,
                       o_ref, *, n_heads):
    x = x_ref[...]                                   # (T, D) f32 — one batch element
    T, D = x.shape
    dh = D // n_heads
    half = D // 2
    scale = 1.0 / math.sqrt(dh)

    # ---- LN1 + rotate-half RoPE (static slices + concat; no pltpu.roll)
    xn = _layernorm(x, g1_ref[...], b1_ref[...])
    rot_half = jnp.concatenate([-xn[:, half:], xn[:, :half]], axis=-1)
    xr = xn * cos_ref[...] + rot_half * sin_ref[...]

    # ---- fused Q/K/V projection; ONE bf16 cast of the activations for q, k and v
    qkv = (jnp.dot(xr.astype(jnp.bfloat16), wqkv_ref[...],
                   preferred_element_type=jnp.float32) + bqkv_ref[...]
           ).astype(jnp.bfloat16)                    # (T, 3D) bf16

    # ---- per-batch attention (no mask).  Each head's output is folded through its
    #      (dh, D) slice of W_out and accumulated, so no concat and no stacked live
    #      score matrices; at dh=8 the MXU is under-filled regardless (see header).
    o_proj = None
    for h in range(n_heads):                         # static unroll (n_heads small)
        q = qkv[:, h * dh:(h + 1) * dh]
        k = qkv[:, D + h * dh:D + (h + 1) * dh]
        v = qkv[:, 2 * D + h * dh:2 * D + (h + 1) * dh]
        s = jax.lax.dot_general(q, k, (((1,), (1,)), ((), ())),
                                preferred_element_type=jnp.float32) * scale  # (T, T)
        s = s - jnp.max(s, axis=-1, keepdims=True)
        e = jnp.exp(s)
        p = e / jnp.sum(e, axis=-1, keepdims=True)
        o = jnp.dot(p.astype(jnp.bfloat16), v,
                    preferred_element_type=jnp.float32)                       # (T, dh)
        c = jnp.dot(o.astype(jnp.bfloat16), wo_ref[h * dh:(h + 1) * dh, :],
                    preferred_element_type=jnp.float32)                       # (T, D)
        o_proj = c if o_proj is None else o_proj + c

    # ---- residual + LN2 + FF(GELU) + residual
    x1 = x + o_proj + bo_ref[...]
    y = _layernorm(x1, g2_ref[...], b2_ref[...])
    ff = (jnp.dot(y.astype(jnp.bfloat16), w1_ref[...],
                  preferred_element_type=jnp.float32) + b1f_ref[...])
    ff = _gelu_exact(ff)
    ff = (jnp.dot(ff.astype(jnp.bfloat16), w2_ref[...],
                  preferred_element_type=jnp.float32) + b2f_ref[...])
    o_ref[...] = x1 + ff


def sdpa_block_call(x3, blk, cos, sin, n_heads):
    """x3: (B, T, D) f32; one grid step per batch element ('parallel')."""
    B, T, D = x3.shape
    Dff = blk["w1_bf16"].shape[1]
    const2 = lambda b: (0, 0)
    kernel = functools.partial(_sdpa_block_kernel, n_heads=n_heads)
    return pl.pallas_call(
        kernel,
        grid=(B,),
        in_specs=[
            pl.BlockSpec((None, T, D), lambda b: (b, 0, 0)),   # x (this batch)
            pl.BlockSpec((T, D), const2),                      # cos  (VMEM-resident)
            pl.BlockSpec((T, D), const2),                      # sin  (VMEM-resident)
            pl.BlockSpec((1, D), const2),                      # g1
            pl.BlockSpec((1, D), const2),                      # b1
            pl.BlockSpec((D, 3 * D), const2),                  # wqkv (bf16)
            pl.BlockSpec((1, 3 * D), const2),                  # bqkv
            pl.BlockSpec((D, D), const2),                      # wo   (bf16)
            pl.BlockSpec((1, D), const2),                      # bo
            pl.BlockSpec((1, D), const2),                      # g2
            pl.BlockSpec((1, D), const2),                      # b2
            pl.BlockSpec((D, Dff), const2),                    # w1   (bf16)
            pl.BlockSpec((1, Dff), const2),                    # b1f
            pl.BlockSpec((Dff, D), const2),                    # w2   (bf16)
            pl.BlockSpec((1, D), const2),                      # b2f
        ],
        out_specs=pl.BlockSpec((None, T, D), lambda b: (b, 0, 0)),
        out_shape=jax.ShapeDtypeStruct((B, T, D), jnp.float32),
        input_output_aliases={0: 0},                           # in-place residual stream
        compiler_params=pltpu.CompilerParams(dimension_semantics=("parallel",)),
    )(x3, cos, sin,
      blk["g1"], blk["b1"], blk["wqkv_bf16"], blk["bqkv"],
      blk["wo_bf16"], blk["bo"], blk["g2"], blk["b2"],
      blk["w1_bf16"], blk["b1f"], blk["w2_bf16"], blk["b2f"])


# ----------------------------- conv stem: NHWC im2col + Pallas matmul -------------
def conv2d_nhwc_pallas(x, wm_bf16, b_row, k, stride):
    """x: (B, H, W, Cin) NHWC f32; wm_bf16: (k*k*Cin, Cout) bf16 (pre-laid-out at init).

    NOTE: Cout=8 (<128 lanes) so output stores are lane-masked; acceptable for the
    3 tiny stem convs at this reduced config.
    """
    B, H, W, Cin = x.shape
    Cout = wm_bf16.shape[1]
    sh, sw = stride
    ph = pw = k // 2
    OH = (H + 2 * ph - k) // sh + 1
    OW = (W + 2 * pw - k) // sw + 1
    xp = jnp.pad(x, ((0, 0), (ph, ph), (pw, pw), (0, 0)))
    cols = []
    for di in range(k):
        for dj in range(k):
            cols.append(xp[:, di:di + sh * OH:sh, dj:dj + sw * OW:sw, :])
    pat = jnp.concatenate(cols, axis=-1).reshape(B * OH * OW, k * k * Cin)
    out = matmul_bias(pat, wm_bf16, b_row)
    return out.reshape(B, OH, OW, Cout)


# ----------------------------- RoPE tables ---------------------------------------
def rope_tables(T, D):
    # TODO(synk): `rope` is undefined in the PyTorch source; standard rotate-half
    # RoPE (base 10000) applied to the full d_model pre-projection is assumed.
    half = D // 2
    inv_freq = 1.0 / (10000.0 ** (jnp.arange(half, dtype=jnp.float32) * 2.0 / D))
    ang = jnp.arange(T, dtype=jnp.float32)[:, None] * inv_freq[None, :]     # (T, half)
    cos = jnp.concatenate([jnp.cos(ang), jnp.cos(ang)], axis=-1)
    sin = jnp.concatenate([jnp.sin(ang), jnp.sin(ang)], axis=-1)
    rot = jnp.zeros((D, D), jnp.float32)  # reference-path rotate_half matrix
    idx = jnp.arange(half)
    rot = rot.at[idx + half, idx].set(-1.0)
    rot = rot.at[idx, idx + half].set(1.0)
    return cos, sin, rot


# ----------------------------- parameters ----------------------------------------
def init_params(key, cfg):
    params = {}
    stem = []       # reference layout (OIHW f32)
    stem_mm = []    # Pallas layout: im2col matmul weights, cast to bf16 ONCE here
    in_chs = [1] + cfg.conv_ch[:-1]
    for cin, cout, k, s in zip(in_chs, cfg.conv_ch, cfg.conv_k, cfg.conv_str):
        key, k1, k2 = jax.random.split(key, 3)
        fan_in = cin * k * k
        w = jax.random.normal(k1, (cout, cin, k, k), jnp.float32) / math.sqrt(fan_in)
        b = jax.random.normal(k2, (cout,), jnp.float32) * 0.01
        stem.append((w, b, s))
        wm = jnp.transpose(w, (2, 3, 1, 0)).reshape(k * k * cin, cout)   # (di,dj,cin) order
        stem_mm.append((wm.astype(jnp.bfloat16), b.reshape(1, cout), k, s))
    params["stem"] = stem
    params["stem_mm"] = stem_mm

    # flat = C * F' (same computation BirdJEPA.__init__ does with a dummy input)
    Fp = cfg.n_mels
    for k, s in zip(cfg.conv_k, cfg.conv_str):
        Fp = (Fp + 2 * (k // 2) - k) // s[0] + 1
    flat = cfg.conv_ch[-1] * Fp
    key, kp = jax.random.split(key)
    proj_w = jax.random.normal(kp, (flat, cfg.d_model), jnp.float32) / math.sqrt(flat)
    params["proj_w"] = proj_w
    params["proj_w_bf16"] = proj_w.astype(jnp.bfloat16)

    D, Dff = cfg.d_model, cfg.d_model * cfg.ff_mult
    lin = lambda kk, din, dout: jax.random.normal(kk, (din, dout), jnp.float32) / math.sqrt(din)
    blocks = []
    for _ in range(cfg.layers):
        key, *ks = jax.random.split(key, 7)
        blk = dict(
            g1=jnp.ones((1, D), jnp.float32), b1=jnp.zeros((1, D), jnp.float32),
            wqkv=lin(ks[0], D, 3 * D),                                   # fused Wq|Wk|Wv
            bqkv=jax.random.normal(ks[1], (1, 3 * D), jnp.float32) * 0.01,
            wo=lin(ks[2], D, D), bo=jnp.zeros((1, D), jnp.float32),
            g2=jnp.ones((1, D), jnp.float32), b2=jnp.zeros((1, D), jnp.float32),
            w1=lin(ks[3], D, Dff), b1f=jax.random.normal(ks[4], (1, Dff), jnp.float32) * 0.01,
            w2=lin(ks[5], Dff, D), b2f=jnp.zeros((1, D), jnp.float32),
        )
        # hoisted per-forward-call weight casts: bf16 copies stored once
        blk["wqkv_bf16"] = blk["wqkv"].astype(jnp.bfloat16)
        blk["wo_bf16"] = blk["wo"].astype(jnp.bfloat16)
        blk["w1_bf16"] = blk["w1"].astype(jnp.bfloat16)
        blk["w2_bf16"] = blk["w2"].astype(jnp.bfloat16)
        blocks.append(blk)
    params["blocks"] = blocks
    return params


# ----------------------------- full forward (Pallas) ------------------------------
def birdjepa_forward(spec, params, cfg):
    B = spec.shape[0]
    z = jnp.transpose(spec, (0, 2, 3, 1))                    # NCHW -> NHWC (once)
    for (wm_bf16, b_row, k, s) in params["stem_mm"]:
        z = conv2d_nhwc_pallas(z, wm_bf16, b_row, k, s)
    _, Fp, Tp, C = z.shape
    # matches torch: z.permute(0,3,1,2).flatten(2)  -> (B, T', C*F')
    zt = jnp.transpose(z, (0, 2, 3, 1)).reshape(B * Tp, C * Fp)
    D = cfg.d_model
    x = matmul_bias(zt, params["proj_w_bf16"],
                    jnp.zeros((1, D), jnp.float32)).reshape(B, Tp, D)

    cos, sin, _ = rope_tables(Tp, D)                         # (T, D), not tiled to B*T
    for blk in params["blocks"]:
        x = sdpa_block_call(x, blk, cos, sin, cfg.n_heads)
    return x                                                  # (B, T', D)


# ----------------------------- pure-JAX reference (for sanity check) --------------
def birdjepa_forward_ref(spec, params, cfg):
    HI = jax.lax.Precision.HIGHEST
    z = spec
    for (w, b, s) in params["stem"]:
        k = w.shape[-1]
        z = jax.lax.conv_general_dilated(
            z, w, window_strides=s,
            padding=[(k // 2, k // 2), (k // 2, k // 2)],
            dimension_numbers=("NCHW", "OIHW", "NCHW"),
            precision=HI) + b[None, :, None, None]
    B, C, Fp, Tp = z.shape
    x = jnp.dot(jnp.transpose(z, (0, 3, 1, 2)).reshape(B, Tp, C * Fp),
                params["proj_w"], precision=HI)
    D, H = cfg.d_model, cfg.n_heads
    dh = D // H
    cos, sin, rot = rope_tables(Tp, D)

    def ln(t, g, b):
        mu = t.mean(-1, keepdims=True)
        var = ((t - mu) ** 2).mean(-1, keepdims=True)
        return (t - mu) / jnp.sqrt(var + LN_EPS) * g + b

    for blk in params["blocks"]:
        xn = ln(x, blk["g1"], blk["b1"])
        xr = xn * cos + jnp.dot(xn, rot, precision=HI) * sin
        qkv = jnp.dot(xr, blk["wqkv"], precision=HI) + blk["bqkv"]
        q, kk, v = qkv[..., :D], qkv[..., D:2 * D], qkv[..., 2 * D:]
        q = q.reshape(B, Tp, H, dh).transpose(0, 2, 1, 3)
        kk = kk.reshape(B, Tp, H, dh).transpose(0, 2, 1, 3)
        v = v.reshape(B, Tp, H, dh).transpose(0, 2, 1, 3)
        s_ = jnp.einsum("bhqd,bhkd->bhqk", q, kk, precision=HI) / math.sqrt(dh)
        p = jax.nn.softmax(s_, axis=-1)
        o = jnp.einsum("bhqk,bhkd->bhqd", p, v, precision=HI)
        o = o.transpose(0, 2, 1, 3).reshape(B, Tp, D)
        x = x + (jnp.dot(o, blk["wo"], precision=HI) + blk["bo"])
        y = ln(x, blk["g2"], blk["b2"])
        ff = jnp.dot(y, blk["w1"], precision=HI) + blk["b1f"]
        ff = 0.5 * ff * (1.0 + jax.scipy.special.erf(ff / jnp.sqrt(2.0)))
        x = x + jnp.dot(ff, blk["w2"], precision=HI) + blk["b2f"]
    return x


# ----------------------------- main ------------------------------------------------
if __name__ == "__main__":
    cfg = Cfg()
    key = jax.random.PRNGKey(0)
    key, kx = jax.random.split(key)
    # spec: (batch=2, channels=1, n_mels=16, time=64), like PyTorch NCHW conv input
    spec = jax.random.normal(kx, (2, 1, cfg.n_mels, 64), jnp.float32)
    params = init_params(key, cfg)

    out = jax.block_until_ready(birdjepa_forward(spec, params, cfg))
    ref = jax.block_until_ready(birdjepa_forward_ref(spec, params, cfg))

    assert out.shape == ref.shape, (out.shape, ref.shape)
    max_err = float(jnp.max(jnp.abs(out - ref)))
    if max_err < 5e-2:
        print("KERNEL_OK")
    else:
        print(f"MISMATCH max_abs_err={max_err}")
</pallas_src>

<mosaic_0001>
module attributes {stable_mosaic.version = 11 : i64} {
  func.func @_matmul_bias_kernel(%arg0: i32, %arg1: memref<1024x25xf32, #tpu.memory_space<vmem>>, %arg2: memref<25x8xbf16, #tpu.memory_space<vmem>>, %arg3: memref<1x8xf32, #tpu.memory_space<vmem>>, %arg4: memref<1024x8xf32, #tpu.memory_space<vmem>>) attributes {dimension_semantics = [#tpu.dimension_semantics<parallel>], iteration_bounds = array<i64: 1>, scalar_prefetch = 0 : i64, scratch_operands = 0 : i64, tpu.core_type = #tpu.core_type<tc>, window_params = [{transform_indices = @transform_0, window_bounds = array<i64: 1024, 25>}, {pipeline_mode = #tpu.pipeline_mode<synchronous>, transform_indices = @transform_1, window_bounds = array<i64: 25, 8>}, {pipeline_mode = #tpu.pipeline_mode<synchronous>, transform_indices = @transform_2, window_bounds = array<i64: 1, 8>}, {transform_indices = @transform_3, window_bounds = array<i64: 1024, 8>}]} {
    %c0 = arith.constant 0 : index
    %c0_0 = arith.constant 0 : index
    %0 = vector.load %arg1[%c0, %c0_0] : memref<1024x25xf32, #tpu.memory_space<vmem>>, vector<1024x25xf32>
    %1 = arith.truncf %0 : vector<1024x25xf32> to vector<1024x25xbf16>
    %c0_1 = arith.constant 0 : index
    %c0_2 = arith.constant 0 : index
    %2 = vector.load %arg2[%c0_1, %c0_2] : memref<25x8xbf16, #tpu.memory_space<vmem>>, vector<25x8xbf16>
    %cst = arith.constant dense<0.000000e+00> : vector<1024x8xf32>
    %3 = tpu.matmul %1, %2, %cst {dimension_numbers = #tpu.dot_dimension_numbers<[1], [0], [0], [1], [0, 0, 1, 1], [], []>} : vector<1024x25xbf16>, vector<25x8xbf16>, vector<1024x8xf32> -> vector<1024x8xf32>
    %c0_3 = arith.constant 0 : index
    %c0_4 = arith.constant 0 : index
    %4 = vector.load %arg3[%c0_3, %c0_4] : memref<1x8xf32, #tpu.memory_space<vmem>>, vector<1x8xf32>
    %5 = vector.broadcast %4 : vector<1x8xf32> to vector<1024x8xf32>
    %6 = arith.addf %3, %5 : vector<1024x8xf32>
    %c0_5 = arith.constant 0 : index
    %c0_6 = arith.constant 0 : index
    %7 = vector.load %arg4[%c0_5, %c0_6] : memref<1024x8xf32, #tpu.memory_space<vmem>>, vector<1024x8xf32>
    tpu.vector_store %arg4[%c0_5, %c0_6], %6 {strides = array<i32>} : memref<1024x8xf32, #tpu.memory_space<vmem>>, vector<1024x8xf32>,
    return
  }
  func.func @transform_0(%arg0: i32) -> (i32, i32) {
    %c0_i32 = arith.constant 0 : i32
    %c0_i32_0 = arith.constant 0 : i32
    return %arg0, %c0_i32 : i32, i32
  }
  func.func @transform_1(%arg0: i32) -> (i32, i32) {
    %c0_i32 = arith.constant 0 : i32
    %c0_i32_0 = arith.constant 0 : i32
    %c0_i32_1 = arith.constant 0 : i32
    return %c0_i32, %c0_i32_0 : i32, i32
  }
  func.func @transform_2(%arg0: i32) -> (i32, i32) {
    %c0_i32 = arith.constant 0 : i32
    %c0_i32_0 = arith.constant 0 : i32
    %c0_i32_1 = arith.constant 0 : i32
    return %c0_i32, %c0_i32_0 : i32, i32
  }
  func.func @transform_3(%arg0: i32) -> (i32, i32) {
    %c0_i32 = arith.constant 0 : i32
    %c0_i32_0 = arith.constant 0 : i32
    return %arg0, %c0_i32 : i32, i32
  }
}

</mosaic_0001>

<llo_original>
// kernel: tpu_custom_call.1
$region0: #{tpu_custom_call.1}
  #allocation0 [shape = 'u32[]', space=smem, size = 0x4, offset = 0x4, fixed_abs, tag = 'smem constant byte address 0x4 - core index']
  #allocation1 [shape = 'u32[144,128]{1,0:T(1,128)}', space=vmem, size = 0x12000, scoped, tag = 'internal scratch']
  %s0 = inlined_call_operand.vmem [shape: f32[1024,25], index: 0, kind: input, shape index: {}]
  %s1 = inlined_call_operand.vmem [shape: bf16[25,8], index: 1, kind: input, shape index: {}]
  %s2 = inlined_call_operand.vmem [shape: f32[1,8], index: 2, kind: input, shape index: {}]
  %s3 = inlined_call_operand.vmem [shape: f32[1024,8], index: 3, kind: output, shape index: {}]
  %s4 = sld [smem:[#allocation0]]
  $region22: #{tpu_custom_call.1} parent=0
    _
  %s6 = ssub.s32 1, %s4
  %s7 = scalar_select 0, %s6, %s4
  // Predicated region
  $region2: #{tpu_custom_call.1} parent=0 // pred_check
    _
  $region3: #{tpu_custom_call.1} parent=0 // pred_check_branch
    %9 = sbr.rel (0) target = $region5
  $region4: #{tpu_custom_call.1} parent=0 // pred_region
    _
  $region5: #{tpu_custom_call.1} parent=0 // pred_fallthru
    _
  // Predicated region
  $region6: #{tpu_custom_call.1} parent=0 // pred_check
    _
  $region7: #{tpu_custom_call.1} parent=0 // pred_check_branch
    %11 = sbr.rel (0) target = $region9
  $region8: #{tpu_custom_call.1} parent=0 // pred_region
    _
  $region9: #{tpu_custom_call.1} parent=0 // pred_fallthru
    _
  // Predicated region
  $region10: #{tpu_custom_call.1} parent=0 // pred_check
    _
  $region11: #{tpu_custom_call.1} parent=0 // pred_check_branch
    %13 = sbr.rel (0) target = $region13
  $region12: #{tpu_custom_call.1} parent=0 // pred_region
    _
  $region13: #{tpu_custom_call.1} parent=0 // pred_fallthru
    _
  %v15 = vld [vmem:[%s0] sm:$0xff]
  %v16 = vld [vmem:[%s0 + $0x8] sm:$0xff]
  %v17 = vld [vmem:[%s0 + $0x10] sm:$0xff]
  %v18 = vld [vmem:[%s0 + $0x18] sm:$0xff]
  %v19 = vld [vmem:[%s0 + $0x20] sm:$0xff]
  %v20 = vld [vmem:[%s0 + $0x28] sm:$0xff]
  %v21 = vld [vmem:[%s0 + $0x30] sm:$0xff]
  %v22 = vld [vmem:[%s0 + $0x38] sm:$0xff]
  %v23 = vld [vmem:[%s0 + $0x40] sm:$0xff]
  %v24 = vld [vmem:[%s0 + $0x48] sm:$0xff]
  %v25 = vld [vmem:[%s0 + $0x50] sm:$0xff]
  %v26 = vld [vmem:[%s0 + $0x58] sm:$0xff]
  %v27 = vld [vmem:[%s0 + $0x60] sm:$0xff]
  %v28 = vld [vmem:[%s0 + $0x68] sm:$0xff]
  %v29 = vld [vmem:[%s0 + $0x70] sm:$0xff]
  %v30 = vld [vmem:[%s0 + $0x78] sm:$0xff]
  %v31 = vld [vmem:[%s0 + $0x80] sm:$0xff]
  %v32 = vld [vmem:[%s0 + $0x88] sm:$0xff]
  %v33 = vld [vmem:[%s0 + $0x90] sm:$0xff]
  %v34 = vld [vmem:[%s0 + $0x98] sm:$0xff]
  %v35 = vld [vmem:[%s0 + $0xa0] sm:$0xff]
  %v36 = vld [vmem:[%s0 + $0xa8] sm:$0xff]
  %v37 = vld [vmem:[%s0 + $0xb0] sm:$0xff]
  %v38 = vld [vmem:[%s0 + $0xb8] sm:$0xff]
  %v39 = vld [vmem:[%s0 + $0xc0] sm:$0xff]
  %v40 = vld [vmem:[%s0 + $0xc8] sm:$0xff]
  %v41 = vld [vmem:[%s0 + $0xd0] sm:$0xff]
  %v42 = vld [vmem:[%s0 + $0xd8] sm:$0xff]
  %v43 = vld [vmem:[%s0 + $0xe0] sm:$0xff]
  %v44 = vld [vmem:[%s0 + $0xe8] sm:$0xff]
  %v45 = vld [vmem:[%s0 + $0xf0] sm:$0xff]
  %v46 = vld [vmem:[%s0 + $0xf8] sm:$0xff]
  %v47 = vld [vmem:[%s0 + $0x100] sm:$0xff]
  %v48 = vld [vmem:[%s0 + $0x108] sm:$0xff]
  %v49 = vld [vmem:[%s0 + $0x110] sm:$0xff]
  %v50 = vld [vmem:[%s0 + $0x118] sm:$0xff]
  %v51 = vld [vmem:[%s0 + $0x120] sm:$0xff]
  %v52 = vld [vmem:[%s0 + $0x128] sm:$0xff]
  %v53 = vld [vmem:[%s0 + $0x130] sm:$0xff]
  %v54 = vld [vmem:[%s0 + $0x138] sm:$0xff]
  %v55 = vld [vmem:[%s0 + $0x140] sm:$0xff]
  %v56 = vld [vmem:[%s0 + $0x148] sm:$0xff]
  %v57 = vld [vmem:[%s0 + $0x150] sm:$0xff]
  %v58 = vld [vmem:[%s0 + $0x158] sm:$0xff]
  %v59 = vld [vmem:[%s0 + $0x160] sm:$0xff]
  %v60 = vld [vmem:[%s0 + $0x168] sm:$0xff]
  %v61 = vld [vmem:[%s0 + $0x170] sm:$0xff]
  %v62 = vld [vmem:[%s0 + $0x178] sm:$0xff]
  %v63 = vld [vmem:[%s0 + $0x180] sm:$0xff]
  %v64 = vld [vmem:[%s0 + $0x188] sm:$0xff]
  %v65 = vld [vmem:[%s0 + $0x190] sm:$0xff]
  %v66 = vld [vmem:[%s0 + $0x198] sm:$0xff]
  %v67 = vld [vmem:[%s0 + $0x1a0] sm:$0xff]
  %v68 = vld [vmem:[%s0 + $0x1a8] sm:$0xff]
  %v69 = vld [vmem:[%s0 + $0x1b0] sm:$0xff]
  %v70 = vld [vmem:[%s0 + $0x1b8] sm:$0xff]
  %v71 = vld [vmem:[%s0 + $0x1c0] sm:$0xff]
  %v72 = vld [vmem:[%s0 + $0x1c8] sm:$0xff]
  %v73 = vld [vmem:[%s0 + $0x1d0] sm:$0xff]
  %v74 = vld [vmem:[%s0 + $0x1d8] sm:$0xff]
  %v75 = vld [vmem:[%s0 + $0x1e0] sm:$0xff]
  %v76 = vld [vmem:[%s0 + $0x1e8] sm:$0xff]
  %v77 = vld [vmem:[%s0 + $0x1f0] sm:$0xff]
  %v78 = vld [vmem:[%s0 + $0x1f8] sm:$0xff]
  %v79 = vld [vmem:[%s0 + $0x200] sm:$0xff]
  %v80 = vld [vmem:[%s0 + $0x208] sm:$0xff]
  %v81 = vld [vmem:[%s0 + $0x210] sm:$0xff]
  %v82 = vld [vmem:[%s0 + $0x218] sm:$0xff]
  %v83 = vld [vmem:[%s0 + $0x220] sm:$0xff]
  %v84 = vld [vmem:[%s0 + $0x228] sm:$0xff]
  %v85 = vld [vmem:[%s0 + $0x230] sm:$0xff]
  %v86 = vld [vmem:[%s0 + $0x238] sm:$0xff]
  %v87 = vld [vmem:[%s0 + $0x240] sm:$0xff]
  %v88 = vld [vmem:[%s0 + $0x248] sm:$0xff]
  %v89 = vld [vmem:[%s0 + $0x250] sm:$0xff]
  %v90 = vld [vmem:[%s0 + $0x258] sm:$0xff]
  %v91 = vld [vmem:[%s0 + $0x260] sm:$0xff]
  %v92 = vld [vmem:[%s0 + $0x268] sm:$0xff]
  %v93 = vld [vmem:[%s0 + $0x270] sm:$0xff]
  %v94 = vld [vmem:[%s0 + $0x278] sm:$0xff]
  %v95 = vld [vmem:[%s0 + $0x280] sm:$0xff]
  %v96 = vld [vmem:[%s0 + $0x288] sm:$0xff]
  %v97 = vld [vmem:[%s0 + $0x290] sm:$0xff]
  %v98 = vld [vmem:[%s0 + $0x298] sm:$0xff]
  %v99 = vld [vmem:[%s0 + $0x2a0] sm:$0xff]
  %v100 = vld [vmem:[%s0 + $0x2a8] sm:$0xff]
  %v101 = vld [vmem:[%s0 + $0x2b0] sm:$0xff]
  %v102 = vld [vmem:[%s0 + $0x2b8] sm:$0xff]
  %v103 = vld [vmem:[%s0 + $0x2c0] sm:$0xff]
  %v104 = vld [vmem:[%s0 + $0x2c8] sm:$0xff]
  %v105 = vld [vmem:[%s0 + $0x2d0] sm:$0xff]
  %v106 = vld [vmem:[%s0 + $0x2d8] sm:$0xff]
  %v107 = vld [vmem:[%s0 + $0x2e0] sm:$0xff]
  %v108 = vld [vmem:[%s0 + $0x2e8] sm:$0xff]
  %v109 = vld [vmem:[%s0 + $0x2f0] sm:$0xff]
  %v110 = vld [vmem:[%s0 + $0x2f8] sm:$0xff]
  %v111 = vld [vmem:[%s0 + $0x300] sm:$0xff]
  %v112 = vld [vmem:[%s0 + $0x308] sm:$0xff]
  %v113 = vld [vmem:[%s0 + $0x310] sm:$0xff]
  %v114 = vld [vmem:[%s0 + $0x318] sm:$0xff]
  %v115 = vld [vmem:[%s0 + $0x320] sm:$0xff]
  %v116 = vld [vmem:[%s0 + $0x328] sm:$0xff]
  %v117 = vld [vmem:[%s0 + $0x330] sm:$0xff]
  %v118 = vld [vmem:[%s0 + $0x338] sm:$0xff]
  %v119 = vld [vmem:[%s0 + $0x340] sm:$0xff]
  %v120 = vld [vmem:[%s0 + $0x348] sm:$0xff]
  %v121 = vld [vmem:[%s0 + $0x350] sm:$0xff]
  %v122 = vld [vmem:[%s0 + $0x358] sm:$0xff]
  %v123 = vld [vmem:[%s0 + $0x360] sm:$0xff]
  %v124 = vld [vmem:[%s0 + $0x368] sm:$0xff]
  %v125 = vld [vmem:[%s0 + $0x370] sm:$0xff]
  %v126 = vld [vmem:[%s0 + $0x378] sm:$0xff]
  %v127 = vld [vmem:[%s0 + $0x380] sm:$0xff]
  %v128 = vld [vmem:[%s0 + $0x388] sm:$0xff]
  %v129 = vld [vmem:[%s0 + $0x390] sm:$0xff]
  %v130 = vld [vmem:[%s0 + $0x398] sm:$0xff]
  %v131 = vld [vmem:[%s0 + $0x3a0] sm:$0xff]
  %v132 = vld [vmem:[%s0 + $0x3a8] sm:$0xff]
  %v133 = vld [vmem:[%s0 + $0x3b0] sm:$0xff]
  %v134 = vld [vmem:[%s0 + $0x3b8] sm:$0xff]
  %v135 = vld [vmem:[%s0 + $0x3c0] sm:$0xff]
  %v136 = vld [vmem:[%s0 + $0x3c8] sm:$0xff]
  %v137 = vld [vmem:[%s0 + $0x3d0] sm:$0xff]
  %v138 = vld [vmem:[%s0 + $0x3d8] sm:$0xff]
  %v139 = vld [vmem:[%s0 + $0x3e0] sm:$0xff]
  %v140 = vld [vmem:[%s0 + $0x3e8] sm:$0xff]
  %v141 = vld [vmem:[%s0 + $0x3f0] sm:$0xff]
  %v142 = vld [vmem:[%s0 + $0x3f8] sm:$0xff]
  %v143 = vpack.c.bf16 %v16, %v15
  %v144 = vpack.c.bf16 %v18, %v17
  %v145 = vpack.c.bf16 %v20, %v19
  %v146 = vpack.c.bf16 %v22, %v21
  %v147 = vpack.c.bf16 %v24, %v23
  %v148 = vpack.c.bf16 %v26, %v25
  %v149 = vpack.c.bf16 %v28, %v27
  %v150 = vpack.c.bf16 %v30, %v29
  %v151 = vpack.c.bf16 %v32, %v31
  %v152 = vpack.c.bf16 %v34, %v33
  %v153 = vpack.c.bf16 %v36, %v35
  %v154 = vpack.c.bf16 %v38, %v37
  %v155 = vpack.c.bf16 %v40, %v39
  %v156 = vpack.c.bf16 %v42, %v41
  %v157 = vpack.c.bf16 %v44, %v43
  %v158 = vpack.c.bf16 %v46, %v45
  %v159 = vpack.c.bf16 %v48, %v47
  %v160 = vpack.c.bf16 %v50, %v49
  %v161 = vpack.c.bf16 %v52, %v51
  %v162 = vpack.c.bf16 %v54, %v53
  %v163 = vpack.c.bf16 %v56, %v55
  %v164 = vpack.c.bf16 %v58, %v57
  %v165 = vpack.c.bf16 %v60, %v59
  %v166 = vpack.c.bf16 %v62, %v61
  %v167 = vpack.c.bf16 %v64, %v63
  %v168 = vpack.c.bf16 %v66, %v65
  %v169 = vpack.c.bf16 %v68, %v67
  %v170 = vpack.c.bf16 %v70, %v69
  %v171 = vpack.c.bf16 %v72, %v71
  %v172 = vpack.c.bf16 %v74, %v73
  %v173 = vpack.c.bf16 %v76, %v75
  %v174 = vpack.c.bf16 %v78, %v77
  %v175 = vpack.c.bf16 %v80, %v79
  %v176 = vpack.c.bf16 %v82, %v81
  %v177 = vpack.c.bf16 %v84, %v83
  %v178 = vpack.c.bf16 %v86, %v85
  %v179 = vpack.c.bf16 %v88, %v87
  %v180 = vpack.c.bf16 %v90, %v89
  %v181 = vpack.c.bf16 %v92, %v91
  %v182 = vpack.c.bf16 %v94, %v93
  %v183 = vpack.c.bf16 %v96, %v95
  %v184 = vpack.c.bf16 %v98, %v97
  %v185 = vpack.c.bf16 %v100, %v99
  %v186 = vpack.c.bf16 %v102, %v101
  %v187 = vpack.c.bf16 %v104, %v103
  %v188 = vpack.c.bf16 %v106, %v105
  %v189 = vpack.c.bf16 %v108, %v107
  %v190 = vpack.c.bf16 %v110, %v109
  %v191 = vpack.c.bf16 %v112, %v111
  %v192 = vpack.c.bf16 %v114, %v113
  %v193 = vpack.c.bf16 %v116, %v115
  %v194 = vpack.c.bf16 %v118, %v117
  %v195 = vpack.c.bf16 %v120, %v119
  %v196 = vpack.c.bf16 %v122, %v121
  %v197 = vpack.c.bf16 %v124, %v123
  %v198 = vpack.c.bf16 %v126, %v125
  %v199 = vpack.c.bf16 %v128, %v127
  %v200 = vpack.c.bf16 %v130, %v129
  %v201 = vpack.c.bf16 %v132, %v131
  %v202 = vpack.c.bf16 %v134, %v133
  %v203 = vpack.c.bf16 %v136, %v135
  %v204 = vpack.c.bf16 %v138, %v137
  %v205 = vpack.c.bf16 %v140, %v139
  %v206 = vpack.c.bf16 %v142, %v141
  %v207 = vld [vmem:[%s1] sm:$0xf]
  %v208 = vld [vmem:[%s1 + $0x4] sm:$0xf]
  %v209 = vld [vmem:[%s1 + $0x8] sm:$0xf]
  %v210 = vld [vmem:[%s1 + $0xc] sm:$0x1]
  %v211 = vld [vmem:[%s2] sm:$0x1]
  %v213 = vlaneseq
  %v214 = vshrl.u32 %v213, 7
  %v215 = vsub.s32 0, %v214
  %v216 = vrot.slane %v211, %v215
  %v222 = vunpack.c.l.b16 %v207
  %v223 = vunpack.c.l.b16 %v208
  %v224 = vunpack.c.l.b16 %v209
  %v225 = vunpack.c.l.b16 %v210
  %v226 = vpack.c.b16 %v223, %v222
  %v227 = vpack.c.b16 %v225, %v224
  %vm229 = vcmask 203776
  %v231 = vsel %vm229, %v143, 0
  %v234 = vsel %vm229, %v144, 0
  %v237 = vsel %vm229, %v145, 0
  %v240 = vsel %vm229, %v146, 0
  %v243 = vsel %vm229, %v147, 0
  %v246 = vsel %vm229, %v148, 0
  %v249 = vsel %vm229, %v149, 0
  %v252 = vsel %vm229, %v150, 0
  %v255 = vsel %vm229, %v151, 0
  %v258 = vsel %vm229, %v152, 0
  %v261 = vsel %vm229, %v153, 0
  %v264 = vsel %vm229, %v154, 0
  %v267 = vsel %vm229, %v155, 0
  %v270 = vsel %vm229, %v156, 0
  %v273 = vsel %vm229, %v157, 0
  %v276 = vsel %vm229, %v158, 0
  %v279 = vsel %vm229, %v159, 0
  %v282 = vsel %vm229, %v160, 0
  %v285 = vsel %vm229, %v161, 0
  %v288 = vsel %vm229, %v162, 0
  %v291 = vsel %vm229, %v163, 0
  %v294 = vsel %vm229, %v164, 0
  %v297 = vsel %vm229, %v165, 0
  %v300 = vsel %vm229, %v166, 0
  %v303 = vsel %vm229, %v167, 0
  %v306 = vsel %vm229, %v168, 0
  %v309 = vsel %vm229, %v169, 0
  %v312 = vsel %vm229, %v170, 0
  %v315 = vsel %vm229, %v171, 0
  %v318 = vsel %vm229, %v172, 0
  %v321 = vsel %vm229, %v173, 0
  %v324 = vsel %vm229, %v174, 0
  %v327 = vsel %vm229, %v175, 0
  %v330 = vsel %vm229, %v176, 0
  %v333 = vsel %vm229, %v177, 0
  %v336 = vsel %vm229, %v178, 0
  %v339 = vsel %vm229, %v179, 0
  %v342 = vsel %vm229, %v180, 0
  %v345 = vsel %vm229, %v181, 0
  %v348 = vsel %vm229, %v182, 0
  %v351 = vsel %vm229, %v183, 0
  %v354 = vsel %vm229, %v184, 0
  %v357 = vsel %vm229, %v185, 0
  %v360 = vsel %vm229, %v186, 0
  %v363 = vsel %vm229, %v187, 0
  %v366 = vsel %vm229, %v188, 0
  %v369 = vsel %vm229, %v189, 0
  %v372 = vsel %vm229, %v190, 0
  %v375 = vsel %vm229, %v191, 0
  %v378 = vsel %vm229, %v192, 0
  %v381 = vsel %vm229, %v193, 0
  %v384 = vsel %vm229, %v194, 0
  %v387 = vsel %vm229, %v195, 0
  %v390 = vsel %vm229, %v196, 0
  %v393 = vsel %vm229, %v197, 0
  %v396 = vsel %vm229, %v198, 0
  %v399 = vsel %vm229, %v199, 0
  %v402 = vsel %vm229, %v200, 0
  %v405 = vsel %vm229, %v201, 0
  %v408 = vsel %vm229, %v202, 0
  %v411 = vsel %vm229, %v203, 0
  %v414 = vsel %vm229, %v204, 0
  %v417 = vsel %vm229, %v205, 0
  %v420 = vsel %vm229, %v206, 0
  %vm422 = vcmask 1043456
  %vm423 = vcmask 1044480
  %v424 = vsel %vm422, 4294967295, 65535
  %v425 = vsel %vm423, %v424, 0
  %v427 = vand.u32 %v227, %v425
  %429 = vmatprep.subr.bf16.mxu0 0
  %430 = vmatpush1.bf16.msra.mxu0 %v226
  %431 = vmatprep.subr.bf16.mxu0 0
  %432 = vmatpush1.bf16.msra.mxu0 %v427
  %433 = vmatprep.subr.bf16.mxu0 0
  %434 = vmatpush1.bf16.msra.mxu0 0
  %435 = vmatprep.subr.bf16.mxu0 0
  %436 = vmatpush1.bf16.msra.mxu0 0
  %437 = vmatprep.subr.bf16.mxu0 0
  %438 = vmatpush1.bf16.msra.mxu0 0
  %439 = vmatprep.subr.bf16.mxu0 0
  %440 = vmatpush1.bf16.msra.mxu0 0
  %441 = vmatprep.subr.bf16.mxu0 0
  %442 = vmatpush1.bf16.msra.mxu0 0
  %443 = vmatprep.subr.bf16.mxu0 0
  %444 = vmatpush1.bf16.msra.mxu0 0
  %445 = vmatprep.subr.bf16.mxu0 0
  %446 = vmatpush1.bf16.msra.mxu0 0
  %447 = vmatprep.subr.bf16.mxu0 0
  %448 = vmatpush1.bf16.msra.mxu0 0
  %449 = vmatprep.subr.bf16.mxu0 0
  %450 = vmatpush1.bf16.msra.mxu0 0
  %451 = vmatprep.subr.bf16.mxu0 0
  %452 = vmatpush1.bf16.msra.mxu0 0
  %453 = vmatprep.subr.bf16.mxu0 0
  %454 = vmatpush1.bf16.msra.mxu0 0
  %455 = vmatprep.subr.bf16.mxu0 0
  %456 = vmatpush1.bf16.msra.mxu0 0
  %457 = vmatprep.subr.bf16.mxu0 0
  %458 = vmatpush1.bf16.msra.mxu0 0
  %459 = vmatprep.subr.bf16.mxu0 0
  %460 = vmatpush1.bf16.msra.mxu0 0
  %461 = vmatprep.mubr.bf16.mxu0 0
  %462 = vmatmul.mubr.bf16.gmra.mrb[0].mxu0 %v231
  %v463 = vpop.f32.mrb[0].mxu0
  %v464 = vadd.f32 %v216, %v463
  %v465 = vpop.f32.mrb[0].mxu0
  %v466 = vpop.f32.mrb[0].mxu0
  %v467 = vadd.f32 %v216, %v466
  %v468 = vpop.f32.mrb[0].mxu0
  %469 = vmatprep.mubr.bf16.mxu0 0
  %470 = vmatmul.mubr.bf16.gmra.mrb[0].mxu0 %v234
  %v471 = vpop.f32.mrb[0].mxu0
  %v472 = vadd.f32 %v216, %v471
  %v473 = vpop.f32.mrb[0].mxu0
  %v474 = vpop.f32.mrb[0].mxu0
  %v475 = vadd.f32 %v216, %v474
  %v476 = vpop.f32.mrb[0].mxu0
  %477 = vmatprep.mubr.bf16.mxu0 0
  %478 = vmatmul.mubr.bf16.gmra.mrb[0].mxu0 %v237
  %v479 = vpop.f32.mrb[0].mxu0
  %v480 = vadd.f32 %v216, %v479
  %v481 = vpop.f32.mrb[0].mxu0
  %v482 = vpop.f32.mrb[0].mxu0
  %v483 = vadd.f32 %v216, %v482
  %v484 = vpop.f32.mrb[0].mxu0
  %485 = vmatprep.mubr.bf16.mxu0 0
  %486 = vmatmul.mubr.bf16.gmra.mrb[0].mxu0 %v240
  %v487 = vpop.f32.mrb[0].mxu0
  %v488 = vadd.f32 %v216, %v487
  %v489 = vpop.f32.mrb[0].mxu0
  %v490 = vpop.f32.mrb[0].mxu0
  %v491 = vadd.f32 %v216, %v490
  %v492 = vpop.f32.mrb[0].mxu0
  %493 = vmatprep.mubr.bf16.mxu0 0
  %494 = vmatmul.mubr.bf16.gmra.mrb[0].mxu0 %v243
  %v495 = vpop.f32.mrb[0].mxu0
  %v496 = vadd.f32 %v216, %v495
  %v497 = vpop.f32.mrb[0].mxu0
  %v498 = vpop.f32.mrb[0].mxu0
  %v499 = vadd.f32 %v216, %v498
  %v500 = vpop.f32.mrb[0].mxu0
  %501 = vmatprep.mubr.bf16.mxu0 0
  %502 = vmatmul.mubr.bf16.gmra.mrb[0].mxu0 %v246
  %v503 = vpop.f32.mrb[0].mxu0
  %v504 = vadd.f32 %v216, %v503
  %v505 = vpop.f32.mrb[0].mxu0
  %v506 = vpop.f32.mrb[0].mxu0
  %v507 = vadd.f32 %v216, %v506
  %v508 = vpop.f32.mrb[0].mxu0
  %509 = vmatprep.mubr.bf16.mxu0 0
  %510 = vmatmul.mubr.bf16.gmra.mrb[0].mxu0 %v249
  %v511 = vpop.f32.mrb[0].mxu0
  %v512 = vadd.f32 %v216, %v511
  %v513 = vpop.f32.mrb[0].mxu0
  %v514 = vpop.f32.mrb[0].mxu0
  %v515 = vadd.f32 %v216, %v514
  %v516 = vpop.f32.mrb[0].mxu0
  %517 = vmatprep.mubr.bf16.mxu0 0
  %518 = vmatmul.mubr.bf16.gmra.mrb[0].mxu0 %v252
  %v519 = vpop.f32.mrb[0].mxu0
  %v520 = vadd.f32 %v216, %v519
  %v521 = vpop.f32.mrb[0].mxu0
  %v522 = vpop.f32.mrb[0].mxu0
  %v523 = vadd.f32 %v216, %v522
  %v524 = vpop.f32.mrb[0].mxu0
  %525 = vmatprep.mubr.bf16.mxu0 0
  %526 = vmatmul.mubr.bf16.gmra.mrb[0].mxu0 %v255
  %v527 = vpop.f32.mrb[0].mxu0
  %v528 = vadd.f32 %v216, %v527
  %v529 = vpop.f32.mrb[0].mxu0
  %v530 = vpop.f32.mrb[0].mxu0
  %v531 = vadd.f32 %v216, %v530
  %v532 = vpop.f32.mrb[0].mxu0
  %533 = vmatprep.mubr.bf16.mxu0 0
  %534 = vmatmul.mubr.bf16.gmra.mrb[0].mxu0 %v258
  %v535 = vpop.f32.mrb[0].mxu0
  %v536 = vadd.f32 %v216, %v535
  %v537 = vpop.f32.mrb[0].mxu0
  %v538 = vpop.f32.mrb[0].mxu0
  %v539 = vadd.f32 %v216, %v538
  %v540 = vpop.f32.mrb[0].mxu0
  %541 = vmatprep.mubr.bf16.mxu0 0
  %542 = vmatmul.mubr.bf16.gmra.mrb[0].mxu0 %v261
  %v543 = vpop.f32.mrb[0].mxu0
  %v544 = vadd.f32 %v216, %v543
  %v545 = vpop.f32.mrb[0].mxu0
  %v546 = vpop.f32.mrb[0].mxu0
  %v547 = vadd.f32 %v216, %v546
  %v548 = vpop.f32.mrb[0].mxu0
  %549 = vmatprep.mubr.bf16.mxu0 0
  %550 = vmatmul.mubr.bf16.gmra.mrb[0].mxu0 %v264
  %v551 = vpop.f32.mrb[0].mxu0
  %v552 = vadd.f32 %v216, %v551
  %v553 = vpop.f32.mrb[0].mxu0
  %v554 = vpop.f32.mrb[0].mxu0
  %v555 = vadd.f32 %v216, %v554
  %v556 = vpop.f32.mrb[0].mxu0
  %557 = vmatprep.mubr.bf16.mxu0 0
  %558 = vmatmul.mubr.bf16.gmra.mrb[0].mxu0 %v267
  %v559 = vpop.f32.mrb[0].mxu0
  %v560 = vadd.f32 %v216, %v559
  %v561 = vpop.f32.mrb[0].mxu0
  %v562 = vpop.f32.mrb[0].mxu0
  %v563 = vadd.f32 %v216, %v562
  %v564 = vpop.f32.mrb[0].mxu0
  %565 = vmatprep.mubr.bf16.mxu0 0
  %566 = vmatmul.mubr.bf16.gmra.mrb[0].mxu0 %v270
  %v567 = vpop.f32.mrb[0].mxu0
  %v568 = vadd.f32 %v216, %v567
  %v569 = vpop.f32.mrb[0].mxu0
  %v570 = vpop.f32.mrb[0].mxu0
  %v571 = vadd.f32 %v216, %v570
  %v572 = vpop.f32.mrb[0].mxu0
  %573 = vmatprep.mubr.bf16.mxu0 0
  %574 = vmatmul.mubr.bf16.gmra.mrb[0].mxu0 %v273
  %v575 = vpop.f32.mrb[0].mxu0
  %v576 = vadd.f32 %v216, %v575
  %v577 = vpop.f32.mrb[0].mxu0
  %v578 = vpop.f32.mrb[0].mxu0
  %v579 = vadd.f32 %v216, %v578
  %v580 = vpop.f32.mrb[0].mxu0
  %581 = vmatprep.mubr.bf16.mxu0 0
  %582 = vmatmul.mubr.bf16.gmra.mrb[0].mxu0 %v276
  %v583 = vpop.f32.mrb[0].mxu0
  %v584 = vadd.f32 %v216, %v583
  %v585 = vpop.f32.mrb[0].mxu0
  %v586 = vpop.f32.mrb[0].mxu0
  %v587 = vadd.f32 %v216, %v586
  %v588 = vpop.f32.mrb[0].mxu0
  %589 = vmatprep.mubr.bf16.mxu0 0
  %590 = vmatmul.mubr.bf16.gmra.mrb[0].mxu0 %v279
  %v591 = vpop.f32.mrb[0].mxu0
  %v592 = vadd.f32 %v216, %v591
  %v593 = vpop.f32.mrb[0].mxu0
  %v594 = vpop.f32.mrb[0].mxu0
  %v595 = vadd.f32 %v216, %v594
  %v596 = vpop.f32.mrb[0].mxu0
  %597 = vmatprep.mubr.bf16.mxu0 0
  %598 = vmatmul.mubr.bf16.gmra.mrb[0].mxu0 %v282
  %v599 = vpop.f32.mrb[0].mxu0
  %v600 = vadd.f32 %v216, %v599
  %v601 = vpop.f32.mrb[0].mxu0
  %v602 = vpop.f32.mrb[0].mxu0
  %v603 = vadd.f32 %v216, %v602
  %v604 = vpop.f32.mrb[0].mxu0
  %605 = vmatprep.mubr.bf16.mxu0 0
  %606 = vmatmul.mubr.bf16.gmra.mrb[0].mxu0 %v285
  %v607 = vpop.f32.mrb[0].mxu0
  %v608 = vadd.f32 %v216, %v607
  %v609 = vpop.f32.mrb[0].mxu0
  %v610 = vpop.f32.mrb[0].mxu0
  %v611 = vadd.f32 %v216, %v610
  %v612 = vpop.f32.mrb[0].mxu0
  %613 = vmatprep.mubr.bf16.mxu0 0
  %614 = vmatmul.mubr.bf16.gmra.mrb[0].mxu0 %v288
  %v615 = vpop.f32.mrb[0].mxu0
  %v616 = vadd.f32 %v216, %v615
  %v617 = vpop.f32.mrb[0].mxu0
  %v618 = vpop.f32.mrb[0].mxu0
  %v619 = vadd.f32 %v216, %v618
  %v620 = vpop.f32.mrb[0].mxu0
  %621 = vmatprep.mubr.bf16.mxu0 0
  %622 = vmatmul.mubr.bf16.gmra.mrb[0].mxu0 %v291
  %v623 = vpop.f32.mrb[0].mxu0
  %v624 = vadd.f32 %v216, %v623
  %v625 = vpop.f32.mrb[0].mxu0
  %v626 = vpop.f32.mrb[0].mxu0
  %v627 = vadd.f32 %v216, %v626
  %v628 = vpop.f32.mrb[0].mxu0
  %629 = vmatprep.mubr.bf16.mxu0 0
  %630 = vmatmul.mubr.bf16.gmra.mrb[0].mxu0 %v294
  %v631 = vpop.f32.mrb[0].mxu0
  %v632 = vadd.f32 %v216, %v631
  %v633 = vpop.f32.mrb[0].mxu0
  %v634 = vpop.f32.mrb[0].mxu0
  %v635 = vadd.f32 %v216, %v634
  %v636 = vpop.f32.mrb[0].mxu0
  %637 = vmatprep.mubr.bf16.mxu0 0
  %638 = vmatmul.mubr.bf16.gmra.mrb[0].mxu0 %v297
  %v639 = vpop.f32.mrb[0].mxu0
  %v640 = vadd.f32 %v216, %v639
  %v641 = vpop.f32.mrb[0].mxu0
  %v642 = vpop.f32.mrb[0].mxu0
  %v643 = vadd.f32 %v216, %v642
  %v644 = vpop.f32.mrb[0].mxu0
  %645 = vmatprep.mubr.bf16.mxu0 0
  %646 = vmatmul.mubr.bf16.gmra.mrb[0].mxu0 %v300
  %v647 = vpop.f32.mrb[0].mxu0
  %v648 = vadd.f32 %v216, %v647
  %v649 = vpop.f32.mrb[0].mxu0
  %v650 = vpop.f32.mrb[0].mxu0
  %v651 = vadd.f32 %v216, %v650
  %v652 = vpop.f32.mrb[0].mxu0
  %653 = vmatprep.mubr.bf16.mxu0 0
  %654 = vmatmul.mubr.bf16.gmra.mrb[0].mxu0 %v303
  %v655 = vpop.f32.mrb[0].mxu0
  %v656 = vadd.f32 %v216, %v655
  %v657 = vpop.f32.mrb[0].mxu0
  %v658 = vpop.f32.mrb[0].mxu0
  %v659 = vadd.f32 %v216, %v658
  %v660 = vpop.f32.mrb[0].mxu0
  %661 = vmatprep.mubr.bf16.mxu0 0
  %662 = vmatmul.mubr.bf16.gmra.mrb[0].mxu0 %v306
  %v663 = vpop.f32.mrb[0].mxu0
  %v664 = vadd.f32 %v216, %v663
  %v665 = vpop.f32.mrb[0].mxu0
  %v666 = vpop.f32.mrb[0].mxu0
  %v667 = vadd.f32 %v216, %v666
  %v668 = vpop.f32.mrb[0].mxu0
  %669 = vmatprep.mubr.bf16.mxu0 0
  %670 = vmatmul.mubr.bf16.gmra.mrb[0].mxu0 %v309
  %v671 = vpop.f32.mrb[0].mxu0
  %v672 = vadd.f32 %v216, %v671
  %v673 = vpop.f32.mrb[0].mxu0
  %v674 = vpop.f32.mrb[0].mxu0
  %v675 = vadd.f32 %v216, %v674
  %v676 = vpop.f32.mrb[0].mxu0
  %677 = vmatprep.mubr.bf16.mxu0 0
  %678 = vmatmul.mubr.bf16.gmra.mrb[0].mxu0 %v312
  %v679 = vpop.f32.mrb[0].mxu0
  %v680 = vadd.f32 %v216, %v679
  %v681 = vpop.f32.mrb[0].mxu0
  %v682 = vpop.f32.mrb[0].mxu0
  %v683 = vadd.f32 %v216, %v682
  %v684 = vpop.f32.mrb[0].mxu0
  %685 = vmatprep.mubr.bf16.mxu0 0
  %686 = vmatmul.mubr.bf16.gmra.mrb[0].mxu0 %v315
  %v687 = vpop.f32.mrb[0].mxu0
  %v688 = vadd.f32 %v216, %v687
  %v689 = vpop.f32.mrb[0].mxu0
  %v690 = vpop.f32.mrb[0].mxu0
  %v691 = vadd.f32 %v216, %v690
  %v692 = vpop.f32.mrb[0].mxu0
  %693 = vmatprep.mubr.bf16.mxu0 0
  %694 = vmatmul.mubr.bf16.gmra.mrb[0].mxu0 %v318
  %v695 = vpop.f32.mrb[0].mxu0
  %v696 = vadd.f32 %v216, %v695
  %v697 = vpop.f32.mrb[0].mxu0
  %v698 = vpop.f32.mrb[0].mxu0
  %v699 = vadd.f32 %v216, %v698
  %v700 = vpop.f32.mrb[0].mxu0
  %701 = vmatprep.mubr.bf16.mxu0 0
  %702 = vmatmul.mubr.bf16.gmra.mrb[0].mxu0 %v321
  %v703 = vpop.f32.mrb[0].mxu0
  %v704 = vadd.f32 %v216, %v703
  %v705 = vpop.f32.mrb[0].mxu0
  %v706 = vpop.f32.mrb[0].mxu0
  %v707 = vadd.f32 %v216, %v706
  %v708 = vpop.f32.mrb[0].mxu0
  %709 = vmatprep.mubr.bf16.mxu0 0
  %710 = vmatmul.mubr.bf16.gmra.mrb[0].mxu0 %v324
  %v711 = vpop.f32.mrb[0].mxu0
  %v712 = vadd.f32 %v216, %v711
  %v713 = vpop.f32.mrb[0].mxu0
  %v714 = vpop.f32.mrb[0].mxu0
  %v715 = vadd.f32 %v216, %v714
  %v716 = vpop.f32.mrb[0].mxu0
  %717 = vmatprep.mubr.bf16.mxu0 0
  %718 = vmatmul.mubr.bf16.gmra.mrb[0].mxu0 %v327
  %v719 = vpop.f32.mrb[0].mxu0
  %v720 = vadd.f32 %v216, %v719
  %v721 = vpop.f32.mrb[0].mxu0
  %v722 = vpop.f32.mrb[0].mxu0
  %v723 = vadd.f32 %v216, %v722
  %v724 = vpop.f32.mrb[0].mxu0
  %725 = vmatprep.mubr.bf16.mxu0 0
  %726 = vmatmul.mubr.bf16.gmra.mrb[0].mxu0 %v330
  %v727 = vpop.f32.mrb[0].mxu0
  %v728 = vadd.f32 %v216, %v727
  %v729 = vpop.f32.mrb[0].mxu0
  %v730 = vpop.f32.mrb[0].mxu0
  %v731 = vadd.f32 %v216, %v730
  %v732 = vpop.f32.mrb[0].mxu0
  %733 = vmatprep.mubr.bf16.mxu0 0
  %734 = vmatmul.mubr.bf16.gmra.mrb[0].mxu0 %v333
  %v735 = vpop.f32.mrb[0].mxu0
  %v736 = vadd.f32 %v216, %v735
  %v737 = vpop.f32.mrb[0].mxu0
  %v738 = vpop.f32.mrb[0].mxu0
  %v739 = vadd.f32 %v216, %v738
  %v740 = vpop.f32.mrb[0].mxu0
  %741 = vmatprep.mubr.bf16.mxu0 0
  %742 = vmatmul.mubr.bf16.gmra.mrb[0].mxu0 %v336
  %v743 = vpop.f32.mrb[0].mxu0
  %v744 = vadd.f32 %v216, %v743
  %v745 = vpop.f32.mrb[0].mxu0
  %v746 = vpop.f32.mrb[0].mxu0
  %v747 = vadd.f32 %v216, %v746
  %v748 = vpop.f32.mrb[0].mxu0
  %749 = vmatprep.mubr.bf16.mxu0 0
  %750 = vmatmul.mubr.bf16.gmra.mrb[0].mxu0 %v339
  %v751 = vpop.f32.mrb[0].mxu0
  %v752 = vadd.f32 %v216, %v751
  %v753 = vpop.f32.mrb[0].mxu0
  %v754 = vpop.f32.mrb[0].mxu0
  %v755 = vadd.f32 %v216, %v754
  %v756 = vpop.f32.mrb[0].mxu0
  %757 = vmatprep.mubr.bf16.mxu0 0
  %758 = vmatmul.mubr.bf16.gmra.mrb[0].mxu0 %v342
  %v759 = vpop.f32.mrb[0].mxu0
  %v760 = vadd.f32 %v216, %v759
  %v761 = vpop.f32.mrb[0].mxu0
  %v762 = vpop.f32.mrb[0].mxu0
  %v763 = vadd.f32 %v216, %v762
  %v764 = vpop.f32.mrb[0].mxu0
  %765 = vmatprep.mubr.bf16.mxu0 0
  %766 = vmatmul.mubr.bf16.gmra.mrb[0].mxu0 %v345
  %v767 = vpop.f32.mrb[0].mxu0
  %v768 = vadd.f32 %v216, %v767
  %v769 = vpop.f32.mrb[0].mxu0
  %v770 = vpop.f32.mrb[0].mxu0
  %v771 = vadd.f32 %v216, %v770
  %v772 = vpop.f32.mrb[0].mxu0
  %773 = vmatprep.mubr.bf16.mxu0 0
  %774 = vmatmul.mubr.bf16.gmra.mrb[0].mxu0 %v348
  %v775 = vpop.f32.mrb[0].mxu0
  %v776 = vadd.f32 %v216, %v775
  %v777 = vpop.f32.mrb[0].mxu0
  %v778 = vpop.f32.mrb[0].mxu0
  %v779 = vadd.f32 %v216, %v778
  %v780 = vpop.f32.mrb[0].mxu0
  %781 = vmatprep.mubr.bf16.mxu0 0
  %782 = vmatmul.mubr.bf16.gmra.mrb[0].mxu0 %v351
  %v783 = vpop.f32.mrb[0].mxu0
  %v784 = vadd.f32 %v216, %v783
  %v785 = vpop.f32.mrb[0].mxu0
  %v786 = vpop.f32.mrb[0].mxu0
  %v787 = vadd.f32 %v216, %v786
  %v788 = vpop.f32.mrb[0].mxu0
  %789 = vmatprep.mubr.bf16.mxu0 0
  %790 = vmatmul.mubr.bf16.gmra.mrb[0].mxu0 %v354
  %v791 = vpop.f32.mrb[0].mxu0
  %v792 = vadd.f32 %v216, %v791
  %v793 = vpop.f32.mrb[0].mxu0
  %v794 = vpop.f32.mrb[0].mxu0
  %v795 = vadd.f32 %v216, %v794
  %v796 = vpop.f32.mrb[0].mxu0
  %797 = vmatprep.mubr.bf16.mxu0 0
  %798 = vmatmul.mubr.bf16.gmra.mrb[0].mxu0 %v357
  %v799 = vpop.f32.mrb[0].mxu0
  %v800 = vadd.f32 %v216, %v799
  %v801 = vpop.f32.mrb[0].mxu0
  %v802 = vpop.f32.mrb[0].mxu0
  %v803 = vadd.f32 %v216, %v802
  %v804 = vpop.f32.mrb[0].mxu0
  %805 = vmatprep.mubr.bf16.mxu0 0
  %806 = vmatmul.mubr.bf16.gmra.mrb[0].mxu0 %v360
  %v807 = vpop.f32.mrb[0].mxu0
  %v808 = vadd.f32 %v216, %v807
  %v809 = vpop.f32.mrb[0].mxu0
  %v810 = vpop.f32.mrb[0].mxu0
  %v811 = vadd.f32 %v216, %v810
  %v812 = vpop.f32.mrb[0].mxu0
  %813 = vmatprep.mubr.bf16.mxu0 0
  %814 = vmatmul.mubr.bf16.gmra.mrb[0].mxu0 %v363
  %v815 = vpop.f32.mrb[0].mxu0
  %v816 = vadd.f32 %v216, %v815
  %v817 = vpop.f32.mrb[0].mxu0
  %v818 = vpop.f32.mrb[0].mxu0
  %v819 = vadd.f32 %v216, %v818
  %v820 = vpop.f32.mrb[0].mxu0
  %821 = vmatprep.mubr.bf16.mxu0 0
  %822 = vmatmul.mubr.bf16.gmra.mrb[0].mxu0 %v366
  %v823 = vpop.f32.mrb[0].mxu0
  %v824 = vadd.f32 %v216, %v823
  %v825 = vpop.f32.mrb[0].mxu0
  %v826 = vpop.f32.mrb[0].mxu0
  %v827 = vadd.f32 %v216, %v826
  %v828 = vpop.f32.mrb[0].mxu0
  %829 = vmatprep.mubr.bf16.mxu0 0
  %830 = vmatmul.mubr.bf16.gmra.mrb[0].mxu0 %v369
  %v831 = vpop.f32.mrb[0].mxu0
  %v832 = vadd.f32 %v216, %v831
  %v833 = vpop.f32.mrb[0].mxu0
  %v834 = vpop.f32.mrb[0].mxu0
  %v835 = vadd.f32 %v216, %v834
  %v836 = vpop.f32.mrb[0].mxu0
  %837 = vmatprep.mubr.bf16.mxu0 0
  %838 = vmatmul.mubr.bf16.gmra.mrb[0].mxu0 %v372
  %v839 = vpop.f32.mrb[0].mxu0
  %v840 = vadd.f32 %v216, %v839
  %v841 = vpop.f32.mrb[0].mxu0
  %v842 = vpop.f32.mrb[0].mxu0
  %v843 = vadd.f32 %v216, %v842
  %v844 = vpop.f32.mrb[0].mxu0
  %845 = vmatprep.mubr.bf16.mxu0 0
  %846 = vmatmul.mubr.bf16.gmra.mrb[0].mxu0 %v375
  %v847 = vpop.f32.mrb[0].mxu0
  %v848 = vadd.f32 %v216, %v847
  %v849 = vpop.f32.mrb[0].mxu0
  %v850 = vpop.f32.mrb[0].mxu0
  %v851 = vadd.f32 %v216, %v850
  %v852 = vpop.f32.mrb[0].mxu0
  %853 = vmatprep.mubr.bf16.mxu0 0
  %854 = vmatmul.mubr.bf16.gmra.mrb[0].mxu0 %v378
  %v855 = vpop.f32.mrb[0].mxu0
  %v856 = vadd.f32 %v216, %v855
  %v857 = vpop.f32.mrb[0].mxu0
  %v858 = vpop.f32.mrb[0].mxu0
  %v859 = vadd.f32 %v216, %v858
  %v860 = vpop.f32.mrb[0].mxu0
  %861 = vmatprep.mubr.bf16.mxu0 0
  %862 = vmatmul.mubr.bf16.gmra.mrb[0].mxu0 %v381
  %v863 = vpop.f32.mrb[0].mxu0
  %v864 = vadd.f32 %v216, %v863
  %v865 = vpop.f32.mrb[0].mxu0
  %v866 = vpop.f32.mrb[0].mxu0
  %v867 = vadd.f32 %v216, %v866
  %v868 = vpop.f32.mrb[0].mxu0
  %869 = vmatprep.mubr.bf16.mxu0 0
  %870 = vmatmul.mubr.bf16.gmra.mrb[0].mxu0 %v384
  %v871 = vpop.f32.mrb[0].mxu0
  %v872 = vadd.f32 %v216, %v871
  %v873 = vpop.f32.mrb[0].mxu0
  %v874 = vpop.f32.mrb[0].mxu0
  %v875 = vadd.f32 %v216, %v874
  %v876 = vpop.f32.mrb[0].mxu0
  %877 = vmatprep.mubr.bf16.mxu0 0
  %878 = vmatmul.mubr.bf16.gmra.mrb[0].mxu0 %v387
  %v879 = vpop.f32.mrb[0].mxu0
  %v880 = vadd.f32 %v216, %v879
  %v881 = vpop.f32.mrb[0].mxu0
  %v882 = vpop.f32.mrb[0].mxu0
  %v883 = vadd.f32 %v216, %v882
  %v884 = vpop.f32.mrb[0].mxu0
  %885 = vmatprep.mubr.bf16.mxu0 0
  %886 = vmatmul.mubr.bf16.gmra.mrb[0].mxu0 %v390
  %v887 = vpop.f32.mrb[0].mxu0
  %v888 = vadd.f32 %v216, %v887
  %v889 = vpop.f32.mrb[0].mxu0
  %v890 = vpop.f32.mrb[0].mxu0
  %v891 = vadd.f32 %v216, %v890
  %v892 = vpop.f32.mrb[0].mxu0
  %893 = vmatprep.mubr.bf16.mxu0 0
  %894 = vmatmul.mubr.bf16.gmra.mrb[0].mxu0 %v393
  %v895 = vpop.f32.mrb[0].mxu0
  %v896 = vadd.f32 %v216, %v895
  %v897 = vpop.f32.mrb[0].mxu0
  %v898 = vpop.f32.mrb[0].mxu0
  %v899 = vadd.f32 %v216, %v898
  %v900 = vpop.f32.mrb[0].mxu0
  %901 = vmatprep.mubr.bf16.mxu0 0
  %902 = vmatmul.mubr.bf16.gmra.mrb[0].mxu0 %v396
  %v903 = vpop.f32.mrb[0].mxu0
  %v904 = vadd.f32 %v216, %v903
  %v905 = vpop.f32.mrb[0].mxu0
  %v906 = vpop.f32.mrb[0].mxu0
  %v907 = vadd.f32 %v216, %v906
  %v908 = vpop.f32.mrb[0].mxu0
  %909 = vmatprep.mubr.bf16.mxu0 0
  %910 = vmatmul.mubr.bf16.gmra.mrb[0].mxu0 %v399
  %v911 = vpop.f32.mrb[0].mxu0
  %v912 = vadd.f32 %v216, %v911
  %v913 = vpop.f32.mrb[0].mxu0
  %v914 = vpop.f32.mrb[0].mxu0
  %v915 = vadd.f32 %v216, %v914
  %v916 = vpop.f32.mrb[0].mxu0
  %917 = vmatprep.mubr.bf16.mxu0 0
  %918 = vmatmul.mubr.bf16.gmra.mrb[0].mxu0 %v402
  %v919 = vpop.f32.mrb[0].mxu0
  %v920 = vadd.f32 %v216, %v919
  %v921 = vpop.f32.mrb[0].mxu0
  %v922 = vpop.f32.mrb[0].mxu0
  %v923 = vadd.f32 %v216, %v922
  %v924 = vpop.f32.mrb[0].mxu0
  %925 = vmatprep.mubr.bf16.mxu0 0
  %926 = vmatmul.mubr.bf16.gmra.mrb[0].mxu0 %v405
  %v927 = vpop.f32.mrb[0].mxu0
  %v928 = vadd.f32 %v216, %v927
  %v929 = vpop.f32.mrb[0].mxu0
  %v930 = vpop.f32.mrb[0].mxu0
  %v931 = vadd.f32 %v216, %v930
  %v932 = vpop.f32.mrb[0].mxu0
  %933 = vmatprep.mubr.bf16.mxu0 0
  %934 = vmatmul.mubr.bf16.gmra.mrb[0].mxu0 %v408
  %v935 = vpop.f32.mrb[0].mxu0
  %v936 = vadd.f32 %v216, %v935
  %v937 = vpop.f32.mrb[0].mxu0
  %v938 = vpop.f32.mrb[0].mxu0
  %v939 = vadd.f32 %v216, %v938
  %v940 = vpop.f32.mrb[0].mxu0
  %941 = vmatprep.mubr.bf16.mxu0 0
  %942 = vmatmul.mubr.bf16.gmra.mrb[0].mxu0 %v411
  %v943 = vpop.f32.mrb[0].mxu0
  %v944 = vadd.f32 %v216, %v943
  %v945 = vpop.f32.mrb[0].mxu0
  %v946 = vpop.f32.mrb[0].mxu0
  %v947 = vadd.f32 %v216, %v946
  %v948 = vpop.f32.mrb[0].mxu0
  %949 = vmatprep.mubr.bf16.mxu0 0
  %950 = vmatmul.mubr.bf16.gmra.mrb[0].mxu0 %v414
  %v951 = vpop.f32.mrb[0].mxu0
  %v952 = vadd.f32 %v216, %v951
  %v953 = vpop.f32.mrb[0].mxu0
  %v954 = vpop.f32.mrb[0].mxu0
  %v955 = vadd.f32 %v216, %v954
  %v956 = vpop.f32.mrb[0].mxu0
  %957 = vmatprep.mubr.bf16.mxu0 0
  %958 = vmatmul.mubr.bf16.gmra.mrb[0].mxu0 %v417
  %v959 = vpop.f32.mrb[0].mxu0
  %v960 = vadd.f32 %v216, %v959
  %v961 = vpop.f32.mrb[0].mxu0
  %v962 = vpop.f32.mrb[0].mxu0
  %v963 = vadd.f32 %v216, %v962
  %v964 = vpop.f32.mrb[0].mxu0
  %965 = vmatprep.mubr.bf16.mxu0 0
  %966 = vmatmul.mubr.bf16.gmra.mrb[0].mxu0 %v420
  %v967 = vpop.f32.mrb[0].mxu0
  %v968 = vadd.f32 %v216, %v967
  %v969 = vpop.f32.mrb[0].mxu0
  %v970 = vpop.f32.mrb[0].mxu0
  %v971 = vadd.f32 %v216, %v970
  %v972 = vpop.f32.mrb[0].mxu0
  %973 = vdwg.mxu0
  %vm974 = vcmask 64512
  %975 = vst.msk [vmem:[%s3] sm:$0xff] %vm974, %v464
  %976 = vst.msk [vmem:[%s3 + $0x8] sm:$0xff] %vm974, %v467
  %977 = vst.msk [vmem:[%s3 + $0x10] sm:$0xff] %vm974, %v472
  %978 = vst.msk [vmem:[%s3 + $0x18] sm:$0xff] %vm974, %v475
  %979 = vst.msk [vmem:[%s3 + $0x20] sm:$0xff] %vm974, %v480
  %980 = vst.msk [vmem:[%s3 + $0x28] sm:$0xff] %vm974, %v483
  %981 = vst.msk [vmem:[%s3 + $0x30] sm:$0xff] %vm974, %v488
  %982 = vst.msk [vmem:[%s3 + $0x38] sm:$0xff] %vm974, %v491
  %983 = vst.msk [vmem:[%s3 + $0x40] sm:$0xff] %vm974, %v496
  %984 = vst.msk [vmem:[%s3 + $0x48] sm:$0xff] %vm974, %v499
  %985 = vst.msk [vmem:[%s3 + $0x50] sm:$0xff] %vm974, %v504
  %986 = vst.msk [vmem:[%s3 + $0x58] sm:$0xff] %vm974, %v507
  %987 = vst.msk [vmem:[%s3 + $0x60] sm:$0xff] %vm974, %v512
  %988 = vst.msk [vmem:[%s3 + $0x68] sm:$0xff] %vm974, %v515
  %989 = vst.msk [vmem:[%s3 + $0x70] sm:$0xff] %vm974, %v520
  %990 = vst.msk [vmem:[%s3 + $0x78] sm:$0xff] %vm974, %v523
  %991 = vst.msk [vmem:[%s3 + $0x80] sm:$0xff] %vm974, %v528
  %992 = vst.msk [vmem:[%s3 + $0x88] sm:$0xff] %vm974, %v531
  %993 = vst.msk [vmem:[%s3 + $0x90] sm:$0xff] %vm974, %v536
  %994 = vst.msk [vmem:[%s3 + $0x98] sm:$0xff] %vm974, %v539
  %995 = vst.msk [vmem:[%s3 + $0xa0] sm:$0xff] %vm974, %v544
  %996 = vst.msk [vmem:[%s3 + $0xa8] sm:$0xff] %vm974, %v547
  %997 = vst.msk [vmem:[%s3 + $0xb0] sm:$0xff] %vm974, %v552
  %998 = vst.msk [vmem:[%s3 + $0xb8] sm:$0xff] %vm974, %v555
  %999 = vst.msk [vmem:[%s3 + $0xc0] sm:$0xff] %vm974, %v560
  %1000 = vst.msk [vmem:[%s3 + $0xc8] sm:$0xff] %vm974, %v563
  %1001 = vst.msk [vmem:[%s3 + $0xd0] sm:$0xff] %vm974, %v568
  %1002 = vst.msk [vmem:[%s3 + $0xd8] sm:$0xff] %vm974, %v571
  %1003 = vst.msk [vmem:[%s3 + $0xe0] sm:$0xff] %vm974, %v576
  %1004 = vst.msk [vmem:[%s3 + $0xe8] sm:$0xff] %vm974, %v579
  %1005 = vst.msk [vmem:[%s3 + $0xf0] sm:$0xff] %vm974, %v584
  %1006 = vst.msk [vmem:[%s3 + $0xf8] sm:$0xff] %vm974, %v587
  %1007 = vst.msk [vmem:[%s3 + $0x100] sm:$0xff] %vm974, %v592
  %1008 = vst.msk [vmem:[%s3 + $0x108] sm:$0xff] %vm974, %v595
  %1009 = vst.msk [vmem:[%s3 + $0x110] sm:$0xff] %vm974, %v600
  %1010 = vst.msk [vmem:[%s3 + $0x118] sm:$0xff] %vm974, %v603
  %1011 = vst.msk [vmem:[%s3 + $0x120] sm:$0xff] %vm974, %v608
  %1012 = vst.msk [vmem:[%s3 + $0x128] sm:$0xff] %vm974, %v611
  %1013 = vst.msk [vmem:[%s3 + $0x130] sm:$0xff] %vm974, %v616
  %1014 = vst.msk [vmem:[%s3 + $0x138] sm:$0xff] %vm974, %v619
  %1015 = vst.msk [vmem:[%s3 + $0x140] sm:$0xff] %vm974, %v624
  %1016 = vst.msk [vmem:[%s3 + $0x148] sm:$0xff] %vm974, %v627
  %1017 = vst.msk [vmem:[%s3 + $0x150] sm:$0xff] %vm974, %v632
  %1018 = vst.msk [vmem:[%s3 + $0x158] sm:$0xff] %vm974, %v635
  %1019 = vst.msk [vmem:[%s3 + $0x160] sm:$0xff] %vm974, %v640
  %1020 = vst.msk [vmem:[%s3 + $0x168] sm:$0xff] %vm974, %v643
  %1021 = vst.msk [vmem:[%s3 + $0x170] sm:$0xff] %vm974, %v648
  %1022 = vst.msk [vmem:[%s3 + $0x178] sm:$0xff] %vm974, %v651
  %1023 = vst.msk [vmem:[%s3 + $0x180] sm:$0xff] %vm974, %v656
  %1024 = vst.msk [vmem:[%s3 + $0x188] sm:$0xff] %vm974, %v659
  %1025 = vst.msk [vmem:[%s3 + $0x190] sm:$0xff] %vm974, %v664
  %1026 = vst.msk [vmem:[%s3 + $0x198] sm:$0xff] %vm974, %v667
  %1027 = vst.msk [vmem:[%s3 + $0x1a0] sm:$0xff] %vm974, %v672
  %1028 = vst.msk [vmem:[%s3 + $0x1a8] sm:$0xff] %vm974, %v675
  %1029 = vst.msk [vmem:[%s3 + $0x1b0] sm:$0xff] %vm974, %v680
  %1030 = vst.msk [vmem:[%s3 + $0x1b8] sm:$0xff] %vm974, %v683
  %1031 = vst.msk [vmem:[%s3 + $0x1c0] sm:$0xff] %vm974, %v688
  %1032 = vst.msk [vmem:[%s3 + $0x1c8] sm:$0xff] %vm974, %v691
  %1033 = vst.msk [vmem:[%s3 + $0x1d0] sm:$0xff] %vm974, %v696
  %1034 = vst.msk [vmem:[%s3 + $0x1d8] sm:$0xff] %vm974, %v699
  %1035 = vst.msk [vmem:[%s3 + $0x1e0] sm:$0xff] %vm974, %v704
  %1036 = vst.msk [vmem:[%s3 + $0x1e8] sm:$0xff] %vm974, %v707
  %1037 = vst.msk [vmem:[%s3 + $0x1f0] sm:$0xff] %vm974, %v712
  %1038 = vst.msk [vmem:[%s3 + $0x1f8] sm:$0xff] %vm974, %v715
  %1039 = vst.msk [vmem:[%s3 + $0x200] sm:$0xff] %vm974, %v720
  %1040 = vst.msk [vmem:[%s3 + $0x208] sm:$0xff] %vm974, %v723
  %1041 = vst.msk [vmem:[%s3 + $0x210] sm:$0xff] %vm974, %v728
  %1042 = vst.msk [vmem:[%s3 + $0x218] sm:$0xff] %vm974, %v731
  %1043 = vst.msk [vmem:[%s3 + $0x220] sm:$0xff] %vm974, %v736
  %1044 = vst.msk [vmem:[%s3 + $0x228] sm:$0xff] %vm974, %v739
  %1045 = vst.msk [vmem:[%s3 + $0x230] sm:$0xff] %vm974, %v744
  %1046 = vst.msk [vmem:[%s3 + $0x238] sm:$0xff] %vm974, %v747
  %1047 = vst.msk [vmem:[%s3 + $0x240] sm:$0xff] %vm974, %v752
  %1048 = vst.msk [vmem:[%s3 + $0x248] sm:$0xff] %vm974, %v755
  %1049 = vst.msk [vmem:[%s3 + $0x250] sm:$0xff] %vm974, %v760
  %1050 = vst.msk [vmem:[%s3 + $0x258] sm:$0xff] %vm974, %v763
  %1051 = vst.msk [vmem:[%s3 + $0x260] sm:$0xff] %vm974, %v768
  %1052 = vst.msk [vmem:[%s3 + $0x268] sm:$0xff] %vm974, %v771
  %1053 = vst.msk [vmem:[%s3 + $0x270] sm:$0xff] %vm974, %v776
  %1054 = vst.msk [vmem:[%s3 + $0x278] sm:$0xff] %vm974, %v779
  %1055 = vst.msk [vmem:[%s3 + $0x280] sm:$0xff] %vm974, %v784
  %1056 = vst.msk [vmem:[%s3 + $0x288] sm:$0xff] %vm974, %v787
  %1057 = vst.msk [vmem:[%s3 + $0x290] sm:$0xff] %vm974, %v792
  %1058 = vst.msk [vmem:[%s3 + $0x298] sm:$0xff] %vm974, %v795
  %1059 = vst.msk [vmem:[%s3 + $0x2a0] sm:$0xff] %vm974, %v800
  %1060 = vst.msk [vmem:[%s3 + $0x2a8] sm:$0xff] %vm974, %v803
  %1061 = vst.msk [vmem:[%s3 + $0x2b0] sm:$0xff] %vm974, %v808
  %1062 = vst.msk [vmem:[%s3 + $0x2b8] sm:$0xff] %vm974, %v811
  %1063 = vst.msk [vmem:[%s3 + $0x2c0] sm:$0xff] %vm974, %v816
  %1064 = vst.msk [vmem:[%s3 + $0x2c8] sm:$0xff] %vm974, %v819
  %1065 = vst.msk [vmem:[%s3 + $0x2d0] sm:$0xff] %vm974, %v824
  %1066 = vst.msk [vmem:[%s3 + $0x2d8] sm:$0xff] %vm974, %v827
  %1067 = vst.msk [vmem:[%s3 + $0x2e0] sm:$0xff] %vm974, %v832
  %1068 = vst.msk [vmem:[%s3 + $0x2e8] sm:$0xff] %vm974, %v835
  %1069 = vst.msk [vmem:[%s3 + $0x2f0] sm:$0xff] %vm974, %v840
  %1070 = vst.msk [vmem:[%s3 + $0x2f8] sm:$0xff] %vm974, %v843
  %1071 = vst.msk [vmem:[%s3 + $0x300] sm:$0xff] %vm974, %v848
  %1072 = vst.msk [vmem:[%s3 + $0x308] sm:$0xff] %vm974, %v851
  %1073 = vst.msk [vmem:[%s3 + $0x310] sm:$0xff] %vm974, %v856
  %1074 = vst.msk [vmem:[%s3 + $0x318] sm:$0xff] %vm974, %v859
  %1075 = vst.msk [vmem:[%s3 + $0x320] sm:$0xff] %vm974, %v864
  %1076 = vst.msk [vmem:[%s3 + $0x328] sm:$0xff] %vm974, %v867
  %1077 = vst.msk [vmem:[%s3 + $0x330] sm:$0xff] %vm974, %v872
  %1078 = vst.msk [vmem:[%s3 + $0x338] sm:$0xff] %vm974, %v875
  %1079 = vst.msk [vmem:[%s3 + $0x340] sm:$0xff] %vm974, %v880
  %1080 = vst.msk [vmem:[%s3 + $0x348] sm:$0xff] %vm974, %v883
  %1081 = vst.msk [vmem:[%s3 + $0x350] sm:$0xff] %vm974, %v888
  %1082 = vst.msk [vmem:[%s3 + $0x358] sm:$0xff] %vm974, %v891
  %1083 = vst.msk [vmem:[%s3 + $0x360] sm:$0xff] %vm974, %v896
  %1084 = vst.msk [vmem:[%s3 + $0x368] sm:$0xff] %vm974, %v899
  %1085 = vst.msk [vmem:[%s3 + $0x370] sm:$0xff] %vm974, %v904
  %1086 = vst.msk [vmem:[%s3 + $0x378] sm:$0xff] %vm974, %v907
  %1087 = vst.msk [vmem:[%s3 + $0x380] sm:$0xff] %vm974, %v912
  %1088 = vst.msk [vmem:[%s3 + $0x388] sm:$0xff] %vm974, %v915
  %1089 = vst.msk [vmem:[%s3 + $0x390] sm:$0xff] %vm974, %v920
  %1090 = vst.msk [vmem:[%s3 + $0x398] sm:$0xff] %vm974, %v923
  %1091 = vst.msk [vmem:[%s3 + $0x3a0] sm:$0xff] %vm974, %v928
  %1092 = vst.msk [vmem:[%s3 + $0x3a8] sm:$0xff] %vm974, %v931
  %1093 = vst.msk [vmem:[%s3 + $0x3b0] sm:$0xff] %vm974, %v936
  %1094 = vst.msk [vmem:[%s3 + $0x3b8] sm:$0xff] %vm974, %v939
  %1095 = vst.msk [vmem:[%s3 + $0x3c0] sm:$0xff] %vm974, %v944
  %1096 = vst.msk [vmem:[%s3 + $0x3c8] sm:$0xff] %vm974, %v947
  %1097 = vst.msk [vmem:[%s3 + $0x3d0] sm:$0xff] %vm974, %v952
  %1098 = vst.msk [vmem:[%s3 + $0x3d8] sm:$0xff] %vm974, %v955
  %1099 = vst.msk [vmem:[%s3 + $0x3e0] sm:$0xff] %vm974, %v960
  %1100 = vst.msk [vmem:[%s3 + $0x3e8] sm:$0xff] %vm974, %v963
  %1101 = vst.msk [vmem:[%s3 + $0x3f0] sm:$0xff] %vm974, %v968
  %1102 = vst.msk [vmem:[%s3 + $0x3f8] sm:$0xff] %vm974, %v971
  // Predicated region
  $region14: #{tpu_custom_call.1} parent=0 // pred_check
    _
  $region15: #{tpu_custom_call.1} parent=0 // pred_check_branch
    %1104 = sbr.rel (0) target = $region17
  $region16: #{tpu_custom_call.1} parent=0 // pred_region
    _
  $region17: #{tpu_custom_call.1} parent=0 // pred_fallthru
    _
  // Predicated region
  $region18: #{tpu_custom_call.1} parent=0 // pred_check
    _
  $region19: #{tpu_custom_call.1} parent=0 // pred_check_branch
    %1106 = sbr.rel (0) target = $region21
  $region20: #{tpu_custom_call.1} parent=0 // pred_region
    _
  $region21: #{tpu_custom_call.1} parent=0 // pred_fallthru
    _

</llo_original>
